<compile_context>
chip_gen: v6e
topology: v6e:2x2x1
jax: 0.10.0
libtpu: 0.0.40
codegen_flags: <defaults>
</compile_context>

<pallas_src>
import math
import functools

import jax
import jax.numpy as jnp
from jax import lax
from jax.experimental import pallas as pl
from jax.experimental.pallas import tpu as pltpu


# ----------------------------- kernels ------------------------------------

def _noisy_linear_train_kernel(x_ref, xe_ref, wmu_ref, wsig_ref, epsj_ref, b_ref,
                               o_ref, acc_ref):
    """grid = (out_tiles, in_tiles); axis 1 (K) is the sequential reduction.

    x_ref / xe_ref are fully resident, stacked as (n_k, B_p, TK); weights are
    streamed per (j, k) tile.  Noisy weights are never built: the sigma term is
    a second MXU matmul on x*eps_in scaled per output column by eps_out.
    """
    k = pl.program_id(1)

    @pl.when(k == 0)
    def _():
        acc_ref[...] = jnp.zeros_like(acc_ref)

    x = x_ref[k]       # (B_p, TK)
    xe = xe_ref[k]     # (B_p, TK)  == x * eps_in (pre-scaled in the wrapper)

    dims = (((1,), (1,)), ((), ()))   # contract shared K dim of (B,K) x (N,K)
    mu_part = lax.dot_general(x, wmu_ref[...], dims,
                              preferred_element_type=jnp.float32)
    sig_part = lax.dot_general(xe, wsig_ref[...], dims,
                               preferred_element_type=jnp.float32)
    acc_ref[...] += mu_part + epsj_ref[...] * sig_part

    @pl.when(k == pl.num_programs(1) - 1)
    def _():
        o_ref[...] = (acc_ref[...] + b_ref[...]).astype(o_ref.dtype)


def _noisy_linear_eval_kernel(x_ref, wmu_ref, b_ref, o_ref, acc_ref):
    """Eval path: deterministic weights, streams only W_mu / b_mu."""
    k = pl.program_id(1)

    @pl.when(k == 0)
    def _():
        acc_ref[...] = jnp.zeros_like(acc_ref)

    acc_ref[...] += lax.dot_general(
        x_ref[k], wmu_ref[...],
        dimension_numbers=(((1,), (1,)), ((), ())),
        preferred_element_type=jnp.float32)

    @pl.when(k == pl.num_programs(1) - 1)
    def _():
        o_ref[...] = (acc_ref[...] + b_ref[...]).astype(o_ref.dtype)


# ----------------------------- wrapper -------------------------------------

def _round_up(v, m):
    return ((v + m - 1) // m) * m


def _choose_tiles(in_p, out_p, itemsize):
    """Pick (TN, TK).  Small layers -> single (1,1) grid; otherwise large tiles."""
    # Whole layer as one block when a weight matrix is small (CartPole sizes):
    # removes per-step overhead and all accumulator revisits.
    if out_p * in_p * itemsize <= 2 * 1024 * 1024:
        return out_p, in_p

    def pick(dim, cap):
        for t in (cap, 512, 256, 128):
            if t <= dim and dim % t == 0:
                return t
        return 128

    tk = pick(in_p, 1024 if itemsize <= 2 else 512)
    tn = pick(out_p, 512)
    # v7x megacore: keep >= 2 blocks on the parallel (out) axis when possible.
    while out_p // tn < 2 and tn > 128:
        tn //= 2
    return tn, tk


def prepare_noisy_linear_params(weight_mu, weight_sigma, bias_mu, bias_sigma,
                                param_dtype=jnp.bfloat16):
    """One-time prep: pad weights to lane-aligned shapes and cast for streaming.

    Call this OUTSIDE the training step; the forward then never pads/copies the
    weight matrices in HBM.
    """
    out_f, in_f = weight_mu.shape
    out_p = _round_up(out_f, 128)
    in_p = _round_up(in_f, 128)
    wmu_p = jnp.pad(weight_mu, ((0, out_p - out_f), (0, in_p - in_f))).astype(param_dtype)
    wsig_p = jnp.pad(weight_sigma, ((0, out_p - out_f), (0, in_p - in_f))).astype(param_dtype)
    return {
        "weight_mu": wmu_p,            # (out_p, in_p) param_dtype
        "weight_sigma": wsig_p,        # (out_p, in_p) param_dtype
        "bias_mu": bias_mu.astype(jnp.float32),
        "bias_sigma": bias_sigma.astype(jnp.float32),
    }


@functools.partial(jax.jit, static_argnames=("training", "block_out", "block_in"))
def noisy_linear(x, weight_mu_p, weight_sigma_p, bias_mu, bias_sigma,
                 eps_in, eps_out, *, training=True, block_out=None, block_in=None):
    """Forward pass of NoisyLinear.

    training=True  -> y = x @ (W_mu + W_sigma * (eps_out ⊗ eps_in))^T + (b_mu + b_sigma*eps_out)
                      computed as x@W_mu^T + eps_out * ((x*eps_in)@W_sigma^T) + b
    training=False -> y = x @ W_mu^T + b_mu

    weight_mu_p / weight_sigma_p must come from `prepare_noisy_linear_params`
    (pre-padded, pre-cast).  bias/eps are the logical (unpadded) f32 vectors.
    """
    B, in_f = x.shape
    out_f = bias_mu.shape[0]
    out_p, in_p = weight_mu_p.shape
    param_dtype = weight_mu_p.dtype

    b_mult = 16 if param_dtype == jnp.bfloat16 else 8   # bf16 sublane packing
    B_p = _round_up(B, b_mult)

    TN, TK = _choose_tiles(in_p, out_p, jnp.dtype(param_dtype).itemsize)
    if block_out is not None:
        TN = block_out
    if block_in is not None:
        TK = block_in
    n_k = in_p // TK
    grid = (out_p // TN, n_k)

    cparams = pltpu.CompilerParams(
        dimension_semantics=("parallel", "arbitrary"))

    # --- cheap per-call prep (x / bias / eps only; weights untouched) ---
    x_f32 = x.astype(jnp.float32)
    x_pad = jnp.pad(x_f32, ((0, B_p - B), (0, in_p - in_f)))

    def stack_k(a):   # (B_p, in_p) -> (n_k, B_p, TK): resident x, safe K indexing
        return jnp.transpose(a.reshape(B_p, n_k, TK), (1, 0, 2))

    x_stk = stack_k(x_pad.astype(param_dtype))

    if not training:
        bias_row = jnp.pad(bias_mu, (0, out_p - out_f)).reshape(1, out_p)
        out_pad = pl.pallas_call(
            _noisy_linear_eval_kernel,
            out_shape=jax.ShapeDtypeStruct((B_p, out_p), jnp.float32),
            grid=grid,
            in_specs=[
                pl.BlockSpec((n_k, B_p, TK), lambda j, k: (0, 0, 0)),  # x (resident)
                pl.BlockSpec((TN, TK), lambda j, k: (j, k)),           # W_mu
                pl.BlockSpec((1, TN), lambda j, k: (0, j)),            # b_mu
            ],
            out_specs=pl.BlockSpec((B_p, TN), lambda j, k: (0, j)),
            scratch_shapes=[pltpu.VMEM((B_p, TN), jnp.float32)],
            compiler_params=cparams,
        )(x_stk, weight_mu_p, bias_row)
        return out_pad[:B, :out_f].astype(x.dtype)

    # Fold the bias once (O(out)) and pre-scale x by eps_in (O(B*in)) in f32.
    bias = bias_mu + bias_sigma * eps_out
    bias_row = jnp.pad(bias, (0, out_p - out_f)).reshape(1, out_p)
    eps_out_row = jnp.pad(eps_out, (0, out_p - out_f)).reshape(1, out_p)
    xe_pad = jnp.pad(x_f32 * eps_in[None, :], ((0, B_p - B), (0, in_p - in_f)))
    xe_stk = stack_k(xe_pad.astype(param_dtype))

    out_pad = pl.pallas_call(
        _noisy_linear_train_kernel,
        out_shape=jax.ShapeDtypeStruct((B_p, out_p), jnp.float32),
        grid=grid,
        in_specs=[
            pl.BlockSpec((n_k, B_p, TK), lambda j, k: (0, 0, 0)),  # x (resident)
            pl.BlockSpec((n_k, B_p, TK), lambda j, k: (0, 0, 0)),  # x*eps_in (resident)
            pl.BlockSpec((TN, TK), lambda j, k: (j, k)),           # W_mu
            pl.BlockSpec((TN, TK), lambda j, k: (j, k)),           # W_sigma
            pl.BlockSpec((1, TN), lambda j, k: (0, j)),            # eps_out row
            pl.BlockSpec((1, TN), lambda j, k: (0, j)),            # folded bias
        ],
        out_specs=pl.BlockSpec((B_p, TN), lambda j, k: (0, j)),
        scratch_shapes=[pltpu.VMEM((B_p, TN), jnp.float32)],
        compiler_params=cparams,
    )(x_stk, xe_stk, weight_mu_p, weight_sigma_p, eps_out_row, bias_row)
    return out_pad[:B, :out_f].astype(x.dtype)


# ---------------- parameter / noise setup (plain JAX glue) ----------------

def init_noisy_linear_params(key, in_features, out_features, sigma_init=0.5):
    """Mirrors NoisyLinear.reset_parameters()."""
    k_w, k_b = jax.random.split(key)
    mu_range = 1.0 / math.sqrt(in_features)
    weight_mu = jax.random.uniform(k_w, (out_features, in_features),
                                   jnp.float32, -mu_range, mu_range)
    bias_mu = jax.random.uniform(k_b, (out_features,),
                                 jnp.float32, -mu_range, mu_range)
    weight_sigma = jnp.full((out_features, in_features),
                            sigma_init / math.sqrt(in_features), jnp.float32)
    bias_sigma = jnp.full((out_features,),
                          sigma_init / math.sqrt(out_features), jnp.float32)
    return weight_mu, weight_sigma, bias_mu, bias_sigma


def _scale_noise(key, size):
    # f(x) = sign(x) * sqrt(|x|)
    x = jax.random.normal(key, (size,), jnp.float32)
    return jnp.sign(x) * jnp.sqrt(jnp.abs(x))


def reset_noise(key, in_features, out_features):
    """Mirrors NoisyLinear.reset_noise(): returns the FACTORIZED noise vectors
    (eps_in, eps_out); the (out, in) outer product is never materialized."""
    k_i, k_j = jax.random.split(key)
    eps_in = _scale_noise(k_i, in_features)
    eps_out = _scale_noise(k_j, out_features)
    return eps_in, eps_out


# ------------------------------ demo / check ------------------------------

def _check(key, batch, in_features, out_features, param_dtype, tol,
           block_out=None, block_in=None):
    k_param, k_noise, k_x = jax.random.split(key, 3)
    w_mu, w_sigma, b_mu, b_sigma = init_noisy_linear_params(
        k_param, in_features, out_features, sigma_init=0.5)
    eps_in, eps_out = reset_noise(k_noise, in_features, out_features)
    x = jax.random.normal(k_x, (batch, in_features), jnp.float32)

    params = prepare_noisy_linear_params(w_mu, w_sigma, b_mu, b_sigma, param_dtype)

    # Training-mode forward (noisy weights) via the Pallas kernel.
    y = noisy_linear(x, params["weight_mu"], params["weight_sigma"],
                     params["bias_mu"], params["bias_sigma"], eps_in, eps_out,
                     training=True, block_out=block_out, block_in=block_in)
    y = jax.block_until_ready(y)

    # Pure-JAX reference (materializes the outer product, like torch.ger).
    w_ref = w_mu + w_sigma * jnp.outer(eps_out, eps_in)
    b_ref = b_mu + b_sigma * eps_out
    y_ref = x @ w_ref.T + b_ref
    assert y.shape == (batch, out_features)
    err = float(jnp.max(jnp.abs(y - y_ref)))
    assert err < tol, f"train mismatch: max abs err {err}"

    # Eval-mode forward (deterministic weights, mu-only kernel).
    y_eval = noisy_linear(x, params["weight_mu"], params["weight_sigma"],
                          params["bias_mu"], params["bias_sigma"], eps_in, eps_out,
                          training=False, block_out=block_out, block_in=block_in)
    y_eval = jax.block_until_ready(y_eval)
    err_e = float(jnp.max(jnp.abs(y_eval - (x @ w_mu.T + b_mu))))
    assert err_e < tol, f"eval mismatch: max abs err {err_e}"


if __name__ == "__main__":
    key = jax.random.PRNGKey(0)
    k1, k2 = jax.random.split(key)

    # 1) CartPole-sized layer, f32 params, auto single-block (1,1) grid.
    _check(k1, batch=16, in_features=32, out_features=64,
           param_dtype=jnp.float32, tol=2e-2)

    # 2) bf16 weight streaming + forced 128x128 tiles to exercise the multi-tile
    #    (j, k) grid with K-axis accumulation and out-axis parallel sharding.
    _check(k2, batch=16, in_features=384, out_features=256,
           param_dtype=jnp.bfloat16, tol=5e-2, block_out=128, block_in=128)

    print("KERNEL_OK")
</pallas_src>

<mosaic_0001>
module attributes {stable_mosaic.version = 11 : i64} {
  func.func @_noisy_linear_train_kernel(%arg0: i32, %arg1: i32, %arg2: memref<1x16x128xf32, #tpu.memory_space<vmem>>, %arg3: memref<1x16x128xf32, #tpu.memory_space<vmem>>, %arg4: memref<128x128xf32, #tpu.memory_space<vmem>>, %arg5: memref<128x128xf32, #tpu.memory_space<vmem>>, %arg6: memref<1x128xf32, #tpu.memory_space<vmem>>, %arg7: memref<1x128xf32, #tpu.memory_space<vmem>>, %arg8: memref<16x128xf32, #tpu.memory_space<vmem>>, %arg9: memref<16x128xf32, #tpu.memory_space<vmem>>) attributes {dimension_semantics = [#tpu.dimension_semantics<parallel>, #tpu.dimension_semantics<arbitrary>], iteration_bounds = array<i64: 1, 1>, scalar_prefetch = 0 : i64, scratch_operands = 1 : i64, tpu.core_type = #tpu.core_type<tc>, window_params = [{pipeline_mode = #tpu.pipeline_mode<synchronous>, transform_indices = @transform_0, window_bounds = array<i64: 1, 16, 128>}, {pipeline_mode = #tpu.pipeline_mode<synchronous>, transform_indices = @transform_1, window_bounds = array<i64: 1, 16, 128>}, {transform_indices = @transform_2, window_bounds = array<i64: 128, 128>}, {transform_indices = @transform_3, window_bounds = array<i64: 128, 128>}, {transform_indices = @transform_4, window_bounds = array<i64: 1, 128>}, {transform_indices = @transform_5, window_bounds = array<i64: 1, 128>}, {transform_indices = @transform_6, window_bounds = array<i64: 16, 128>}]} {
    %c0_i32 = arith.constant 0 : i32
    %0 = arith.cmpi eq, %arg1, %c0_i32 : i32
    %1 = arith.extui %0 : i1 to i32
    %c0_i32_0 = arith.constant 0 : i32
    %2 = arith.cmpi ne, %1, %c0_i32_0 : i32
    scf.if %2 {
      %cst_17 = arith.constant 0.000000e+00 : f32
      %23 = vector.broadcast %cst_17 : f32 to vector<16x128xf32>
      %c0_18 = arith.constant 0 : index
      %c0_19 = arith.constant 0 : index
      %24 = vector.load %arg9[%c0_18, %c0_19] : memref<16x128xf32, #tpu.memory_space<vmem>>, vector<16x128xf32>
      tpu.vector_store %arg9[%c0_18, %c0_19], %23 {strides = array<i32>} : memref<16x128xf32, #tpu.memory_space<vmem>>, vector<16x128xf32>,
    } else {
    }
    %3 = arith.index_cast %arg1 : i32 to index
    %c0 = arith.constant 0 : index
    %c0_1 = arith.constant 0 : index
    %4 = vector.load %arg2[%3, %c0, %c0_1] : memref<1x16x128xf32, #tpu.memory_space<vmem>>, vector<1x16x128xf32>
    %5 = vector.shape_cast %4 : vector<1x16x128xf32> to vector<16x128xf32>
    %6 = arith.index_cast %arg1 : i32 to index
    %c0_2 = arith.constant 0 : index
    %c0_3 = arith.constant 0 : index
    %7 = vector.load %arg3[%6, %c0_2, %c0_3] : memref<1x16x128xf32, #tpu.memory_space<vmem>>, vector<1x16x128xf32>
    %8 = vector.shape_cast %7 : vector<1x16x128xf32> to vector<16x128xf32>
    %c0_4 = arith.constant 0 : index
    %c0_5 = arith.constant 0 : index
    %9 = vector.load %arg4[%c0_4, %c0_5] : memref<128x128xf32, #tpu.memory_space<vmem>>, vector<128x128xf32>
    %cst = arith.constant dense<0.000000e+00> : vector<16x128xf32>
    %10 = tpu.matmul %5, %9, %cst {dimension_numbers = #tpu.dot_dimension_numbers<[1], [1], [0], [0], [0, 0, 1, 0], [], []>} : vector<16x128xf32>, vector<128x128xf32>, vector<16x128xf32> -> vector<16x128xf32>
    %c0_6 = arith.constant 0 : index
    %c0_7 = arith.constant 0 : index
    %11 = vector.load %arg5[%c0_6, %c0_7] : memref<128x128xf32, #tpu.memory_space<vmem>>, vector<128x128xf32>
    %cst_8 = arith.constant dense<0.000000e+00> : vector<16x128xf32>
    %12 = tpu.matmul %8, %11, %cst_8 {dimension_numbers = #tpu.dot_dimension_numbers<[1], [1], [0], [0], [0, 0, 1, 0], [], []>} : vector<16x128xf32>, vector<128x128xf32>, vector<16x128xf32> -> vector<16x128xf32>
    %c0_9 = arith.constant 0 : index
    %c0_10 = arith.constant 0 : index
    %13 = vector.load %arg9[%c0_9, %c0_10] : memref<16x128xf32, #tpu.memory_space<vmem>>, vector<16x128xf32>
    %c0_11 = arith.constant 0 : index
    %c0_12 = arith.constant 0 : index
    %14 = vector.load %arg6[%c0_11, %c0_12] : memref<1x128xf32, #tpu.memory_space<vmem>>, vector<1x128xf32>
    %15 = vector.broadcast %14 : vector<1x128xf32> to vector<16x128xf32>
    %16 = arith.mulf %15, %12 : vector<16x128xf32>
    %17 = arith.addf %10, %16 : vector<16x128xf32>
    %18 = arith.addf %13, %17 : vector<16x128xf32>
    %c0_13 = arith.constant 0 : index
    %c0_14 = arith.constant 0 : index
    %19 = vector.load %arg9[%c0_13, %c0_14] : memref<16x128xf32, #tpu.memory_space<vmem>>, vector<16x128xf32>
    tpu.vector_store %arg9[%c0_13, %c0_14], %18 {strides = array<i32>} : memref<16x128xf32, #tpu.memory_space<vmem>>, vector<16x128xf32>,
    %c0_i32_15 = arith.constant 0 : i32
    %20 = arith.cmpi eq, %arg1, %c0_i32_15 : i32
    %21 = arith.extui %20 : i1 to i32
    %c0_i32_16 = arith.constant 0 : i32
    %22 = arith.cmpi ne, %21, %c0_i32_16 : i32
    scf.if %22 {
      %c0_17 = arith.constant 0 : index
      %c0_18 = arith.constant 0 : index
      %23 = vector.load %arg9[%c0_17, %c0_18] : memref<16x128xf32, #tpu.memory_space<vmem>>, vector<16x128xf32>
      %c0_19 = arith.constant 0 : index
      %c0_20 = arith.constant 0 : index
      %24 = vector.load %arg7[%c0_19, %c0_20] : memref<1x128xf32, #tpu.memory_space<vmem>>, vector<1x128xf32>
      %25 = vector.broadcast %24 : vector<1x128xf32> to vector<16x128xf32>
      %26 = arith.addf %23, %25 : vector<16x128xf32>
      %c0_21 = arith.constant 0 : index
      %c0_22 = arith.constant 0 : index
      %27 = vector.load %arg8[%c0_21, %c0_22] : memref<16x128xf32, #tpu.memory_space<vmem>>, vector<16x128xf32>
      tpu.vector_store %arg8[%c0_21, %c0_22], %26 {strides = array<i32>} : memref<16x128xf32, #tpu.memory_space<vmem>>, vector<16x128xf32>,
    } else {
    }
    return
  }
  func.func @transform_0(%arg0: i32, %arg1: i32) -> (i32, i32, i32) {
    %c0_i32 = arith.constant 0 : i32
    %c0_i32_0 = arith.constant 0 : i32
    %c0_i32_1 = arith.constant 0 : i32
    %c0_i32_2 = arith.constant 0 : i32
    return %c0_i32, %c0_i32_0, %c0_i32_1 : i32, i32, i32
  }
  func.func @transform_1(%arg0: i32, %arg1: i32) -> (i32, i32, i32) {
    %c0_i32 = arith.constant 0 : i32
    %c0_i32_0 = arith.constant 0 : i32
    %c0_i32_1 = arith.constant 0 : i32
    %c0_i32_2 = arith.constant 0 : i32
    return %c0_i32, %c0_i32_0, %c0_i32_1 : i32, i32, i32
  }
  func.func @transform_2(%arg0: i32, %arg1: i32) -> (i32, i32) {
    %c0_i32 = arith.constant 0 : i32
    return %arg0, %arg1 : i32, i32
  }
  func.func @transform_3(%arg0: i32, %arg1: i32) -> (i32, i32) {
    %c0_i32 = arith.constant 0 : i32
    return %arg0, %arg1 : i32, i32
  }
  func.func @transform_4(%arg0: i32, %arg1: i32) -> (i32, i32) {
    %c0_i32 = arith.constant 0 : i32
    %c0_i32_0 = arith.constant 0 : i32
    return %c0_i32, %arg0 : i32, i32
  }
  func.func @transform_5(%arg0: i32, %arg1: i32) -> (i32, i32) {
    %c0_i32 = arith.constant 0 : i32
    %c0_i32_0 = arith.constant 0 : i32
    return %c0_i32, %arg0 : i32, i32
  }
  func.func @transform_6(%arg0: i32, %arg1: i32) -> (i32, i32) {
    %c0_i32 = arith.constant 0 : i32
    %c0_i32_0 = arith.constant 0 : i32
    return %c0_i32, %arg0 : i32, i32
  }
}

</mosaic_0001>

<llo_original>
// kernel: noisy_linear.1
$region0: #{noisy_linear.1}
  #allocation0 [shape = 'u32[]', space=smem, size = 0x4, offset = 0x4, fixed_abs, tag = 'smem constant byte address 0x4 - core index']
  #allocation1 [shape = 'u32[144,128]{1,0:T(1,128)}', space=vmem, size = 0x12000, scoped, tag = 'internal scratch']
  #allocation2 [shape = 'f32[16,128]{1,0:T(8,128)}', space=vmem, size = 0x2000, scoped, tag = 'scratch operand']
  %s0 = inlined_call_operand.vmem [shape: f32[1,16,128], index: 0, kind: input, shape index: {}]
  %s1 = inlined_call_operand.vmem [shape: f32[1,16,128], index: 1, kind: input, shape index: {}]
  %s2 = inlined_call_operand.hbm [shape: f32[128,128], index: 2, kind: input, shape index: {}]
  %s3 = inlined_call_operand.hbm [shape: f32[128,128], index: 3, kind: input, shape index: {}]
  %s4 = inlined_call_operand.vmem [shape: f32[1,128], index: 4, kind: input, shape index: {}]
  %s5 = inlined_call_operand.vmem [shape: f32[1,128], index: 5, kind: input, shape index: {}]
  %s6 = inlined_call_operand.hbm [shape: f32[16,128], index: 6, kind: output, shape index: {}]
  %s7 = sld [smem:[#allocation0]]
  $region50: #{noisy_linear.1} parent=0
    _
  %s9 = ssub.s32 1, %s7
  %s10 = scalar_select 0, %s9, %s7
  $region1: #{noisy_linear.1} parent=0
    #allocation3 [shape = 'u8[65536]{0}', space=vmem, size = 0x10000, scoped, tag = 'input window, operand 2, single buffered']
    #allocation4 [shape = 's32[1]{0}', space=sflag, size = 0x4, scoped, tag = 'scoped memory for noisy_linear.1']
    #allocation5 [shape = 's32[1]{0}', space=sflag, size = 0x4, scoped, tag = 'scoped memory for noisy_linear.1']
    #allocation6 [shape = 'u8[65536]{0}', space=vmem, size = 0x10000, scoped, tag = 'input window, operand 3, single buffered']
    #allocation7 [shape = 's32[1]{0}', space=sflag, size = 0x4, scoped, tag = 'scoped memory for noisy_linear.1']
    #allocation8 [shape = 'u8[8192]{0}', space=vmem, size = 0x2000, scoped, tag = 'output window, operand 0, single buffered']
    %11 = vsyncpa [#allocation4], 0
    %12 = vsyncpa [#allocation7], 0
    %13 = vsyncpa [#allocation5], 0
    // Predicated region
    $region2: #{noisy_linear.1} parent=1 // pred_check
      _
    $region3: #{noisy_linear.1} parent=1 // pred_check_branch
      %15 = sbr.rel (0) target = $region5
    $region4: #{noisy_linear.1} parent=1 // pred_region
      _
    $region5: #{noisy_linear.1} parent=1 // pred_fallthru
      _
    // Predicated region
    $region6: #{noisy_linear.1} parent=1 // pred_check
      _
    $region7: #{noisy_linear.1} parent=1 // pred_check_branch
      %17 = sbr.rel (0) target = $region9
    $region8: #{noisy_linear.1} parent=1 // pred_region
      _
    $region9: #{noisy_linear.1} parent=1 // pred_fallthru
      _
    // Predicated region
    $region10: #{noisy_linear.1} parent=1 // pred_check
      _
    $region11: #{noisy_linear.1} parent=1 // pred_check_branch
      %19 = sbr.rel (0) target = $region13
    $region12: #{noisy_linear.1} parent=1 // pred_region
      %s21 = ssub.s32 2048, 2048
      %22 = vsyncadd [#allocation4], %s21
      %s23 = sshll.u32 [#allocation3], 4
      %s24 = int_to_ptr.vmem [resolvable:$true] %s23
      %29 = dma.hbm_to_vmem [thread:$0]  %s2, 2048, %s24, [#allocation4], 128, 128, 8
    $region13: #{noisy_linear.1} parent=1 // pred_fallthru
      _
    // Predicated region
    $region14: #{noisy_linear.1} parent=1 // pred_check
      _
    $region15: #{noisy_linear.1} parent=1 // pred_check_branch
      %31 = sbr.rel (0) target = $region17
    $region16: #{noisy_linear.1} parent=1 // pred_region
      %s33 = ssub.s32 2048, 2048
      %34 = vsyncadd [#allocation7], %s33
      %s35 = sshll.u32 [#allocation6], 4
      %s36 = int_to_ptr.vmem [resolvable:$true] %s35
      %41 = dma.hbm_to_vmem [thread:$0]  %s3, 2048, %s36, [#allocation7], 128, 128, 8
    $region17: #{noisy_linear.1} parent=1 // pred_fallthru
      _
    // Predicated region
    $region18: #{noisy_linear.1} parent=1 // pred_check
      _
    $region19: #{noisy_linear.1} parent=1 // pred_check_branch
      %43 = sbr.rel (0) target = $region21
    $region20: #{noisy_linear.1} parent=1 // pred_region
      _
    $region21: #{noisy_linear.1} parent=1 // pred_fallthru
      _
    // Predicated region
    $region22: #{noisy_linear.1} parent=1 // pred_check
      _
    $region23: #{noisy_linear.1} parent=1 // pred_check_branch
      %45 = sbr.rel (0) target = $region25
    $region24: #{noisy_linear.1} parent=1 // pred_region
      _
    $region25: #{noisy_linear.1} parent=1 // pred_fallthru
      _
    // Predicated region
    $region26: #{noisy_linear.1} parent=1 // pred_check
      _
    $region27: #{noisy_linear.1} parent=1 // pred_check_branch
      %47 = sbr.rel (0) target = $region29
    $region28: #{noisy_linear.1} parent=1 // pred_region
      %48 = dma.done [#allocation4], 2048
    $region29: #{noisy_linear.1} parent=1 // pred_fallthru
      _
    // Predicated region
    $region30: #{noisy_linear.1} parent=1 // pred_check
      _
    $region31: #{noisy_linear.1} parent=1 // pred_check_branch
      %50 = sbr.rel (0) target = $region33
    $region32: #{noisy_linear.1} parent=1 // pred_region
      %51 = dma.done [#allocation7], 2048
    $region33: #{noisy_linear.1} parent=1 // pred_fallthru
      _
    %p52 = scmp.eq.s32.totalorder 0, 0
    // Predicated region
    $region34: #{noisy_linear.1} parent=1 // pred_check
      %p53 = pneg %p52
    $region35: #{noisy_linear.1} parent=1 // pred_check_branch
      %55 = sbr.rel (%p53) target = $region37
    $region36: #{noisy_linear.1} parent=1 // pred_region
      %56 = vst [vmem:[#allocation2] sm:$0xff] 0.0
      %57 = vst [vmem:[#allocation2 + $0x8] sm:$0xff] 0.0
    $region37: #{noisy_linear.1} parent=1 // pred_fallthru
      _
    %s58 = smul.u32 0, 16
    %s59 = scalar_lea.vmem %s0, %s58
    %v60 = vld [vmem:[%s59] sm:$0xff]
    %v61 = vld [vmem:[%s59 + $0x8] sm:$0xff]
    %s62 = scalar_lea.vmem %s1, %s58
    %v63 = vld [vmem:[%s62] sm:$0xff]
    %v64 = vld [vmem:[%s62 + $0x8] sm:$0xff]
    %v65 = vld [vmem:[#allocation3] sm:$0xff]
    %v66 = vld [vmem:[#allocation3 + $0x8] sm:$0xff]
    %v67 = vld [vmem:[#allocation3 + $0x10] sm:$0xff]
    %v68 = vld [vmem:[#allocation3 + $0x18] sm:$0xff]
    %v69 = vld [vmem:[#allocation3 + $0x20] sm:$0xff]
    %v70 = vld [vmem:[#allocation3 + $0x28] sm:$0xff]
    %v71 = vld [vmem:[#allocation3 + $0x30] sm:$0xff]
    %v72 = vld [vmem:[#allocation3 + $0x38] sm:$0xff]
    %v73 = vld [vmem:[#allocation3 + $0x40] sm:$0xff]
    %v74 = vld [vmem:[#allocation3 + $0x48] sm:$0xff]
    %v75 = vld [vmem:[#allocation3 + $0x50] sm:$0xff]
    %v76 = vld [vmem:[#allocation3 + $0x58] sm:$0xff]
    %v77 = vld [vmem:[#allocation3 + $0x60] sm:$0xff]
    %v78 = vld [vmem:[#allocation3 + $0x68] sm:$0xff]
    %v79 = vld [vmem:[#allocation3 + $0x70] sm:$0xff]
    %v80 = vld [vmem:[#allocation3 + $0x78] sm:$0xff]
    %v81 = vld [vmem:[#allocation6] sm:$0xff]
    %v82 = vld [vmem:[#allocation6 + $0x8] sm:$0xff]
    %v83 = vld [vmem:[#allocation6 + $0x10] sm:$0xff]
    %v84 = vld [vmem:[#allocation6 + $0x18] sm:$0xff]
    %v85 = vld [vmem:[#allocation6 + $0x20] sm:$0xff]
    %v86 = vld [vmem:[#allocation6 + $0x28] sm:$0xff]
    %v87 = vld [vmem:[#allocation6 + $0x30] sm:$0xff]
    %v88 = vld [vmem:[#allocation6 + $0x38] sm:$0xff]
    %v89 = vld [vmem:[#allocation6 + $0x40] sm:$0xff]
    %v90 = vld [vmem:[#allocation6 + $0x48] sm:$0xff]
    %v91 = vld [vmem:[#allocation6 + $0x50] sm:$0xff]
    %v92 = vld [vmem:[#allocation6 + $0x58] sm:$0xff]
    %v93 = vld [vmem:[#allocation6 + $0x60] sm:$0xff]
    %v94 = vld [vmem:[#allocation6 + $0x68] sm:$0xff]
    %v95 = vld [vmem:[#allocation6 + $0x70] sm:$0xff]
    %v96 = vld [vmem:[#allocation6 + $0x78] sm:$0xff]
    %97 = vmatprep.subr.mxu0 0.0
    %98 = vmatpush1.xpose.msra.mxu0 %v96
    %99 = vmatprep.subr.mxu0 0.0
    %100 = vmatpush1.xpose.msra.mxu0 %v95
    %101 = vmatprep.subr.mxu0 0.0
    %102 = vmatpush1.xpose.msra.mxu0 %v94
    %103 = vmatprep.subr.mxu0 0.0
    %104 = vmatpush1.xpose.msra.mxu0 %v93
    %105 = vmatprep.subr.mxu0 0.0
    %106 = vmatpush1.xpose.msra.mxu0 %v92
    %107 = vmatprep.subr.mxu0 0.0
    %108 = vmatpush1.xpose.msra.mxu0 %v91
    %109 = vmatprep.subr.mxu0 0.0
    %110 = vmatpush1.xpose.msra.mxu0 %v90
    %111 = vmatprep.subr.mxu0 0.0
    %112 = vmatpush1.xpose.msra.mxu0 %v89
    %113 = vmatprep.subr.mxu0 0.0
    %114 = vmatpush1.xpose.msra.mxu0 %v88
    %115 = vmatprep.subr.mxu0 0.0
    %116 = vmatpush1.xpose.msra.mxu0 %v87
    %117 = vmatprep.subr.mxu0 0.0
    %118 = vmatpush1.xpose.msra.mxu0 %v86
    %119 = vmatprep.subr.mxu0 0.0
    %120 = vmatpush1.xpose.msra.mxu0 %v85
    %121 = vmatprep.subr.mxu0 0.0
    %122 = vmatpush1.xpose.msra.mxu0 %v84
    %123 = vmatprep.subr.mxu0 0.0
    %124 = vmatpush1.xpose.msra.mxu0 %v83
    %125 = vmatprep.subr.mxu0 0.0
    %126 = vmatpush1.xpose.msra.mxu0 %v82
    %127 = vmatprep.subr.mxu0 0.0
    %128 = vmatpush1.xpose.msra.mxu0 %v81
    %129 = vmatprep.subr.mxu0 0.0
    %130 = vmatpush2.xpose.msra.mxu0 0.0
    %131 = vmatprep.subr.mxu0 0.0
    %132 = vmatpush2.xpose.msra.mxu0 0.0
    %133 = vmatprep.subr.mxu0 0.0
    %134 = vmatpush2.xpose.msra.mxu0 0.0
    %135 = vmatprep.subr.mxu0 0.0
    %136 = vmatpush2.xpose.msra.mxu0 0.0
    %137 = vmatprep.subr.mxu0 0.0
    %138 = vmatpush2.xpose.msra.mxu0 0.0
    %139 = vmatprep.subr.mxu0 0.0
    %140 = vmatpush2.xpose.msra.mxu0 0.0
    %141 = vmatprep.subr.mxu0 0.0
    %142 = vmatpush2.xpose.msra.mxu0 0.0
    %143 = vmatprep.subr.mxu0 0.0
    %144 = vmatpush2.xpose.msra.mxu0 0.0
    %145 = vmatprep.subr.mxu0 0.0
    %146 = vmatpush2.xpose.msra.mxu0 0.0
    %147 = vmatprep.subr.mxu0 0.0
    %148 = vmatpush2.xpose.msra.mxu0 0.0
    %149 = vmatprep.subr.mxu0 0.0
    %150 = vmatpush2.xpose.msra.mxu0 0.0
    %151 = vmatprep.subr.mxu0 0.0
    %152 = vmatpush2.xpose.msra.mxu0 0.0
    %153 = vmatprep.subr.mxu0 0.0
    %154 = vmatpush2.xpose.msra.mxu0 0.0
    %155 = vmatprep.subr.mxu0 0.0
    %156 = vmatpush2.xpose.msra.mxu0 0.0
    %157 = vmatprep.subr.mxu0 0.0
    %158 = vmatpush2.xpose.msra.mxu0 0.0
    %159 = vmatprep.subr.mxu0 0.0
    %160 = vmatpush2.xpose.msra.mxu0 0.0
    %161 = vmatprep.mubr.f32.mxu0 0.0
    %162 = vmatmul.mubr.f32.gmra.mxu0 %v63
    %v163 = vpop.f32.mrf.mxu0
    %v164 = vadd.f32 0.0, %v163
    %v165 = vpop.f32.mrf.mxu0
    %166 = vmatprep.mubr.f32.mxu0 0.0
    %167 = vmatmul.mubr.f32.gmra.mxu0 %v64
    %v168 = vpop.f32.mrf.mxu0
    %v169 = vadd.f32 0.0, %v168
    %v170 = vpop.f32.mrf.mxu0
    %171 = vdwg.mxu0
    %v172 = vld [vmem:[#allocation2] sm:$0xff]
    %v173 = vld [vmem:[#allocation2 + $0x8] sm:$0xff]
    %v174 = vld [vmem:[%s4] sm:$0x1]
    %v176 = vlaneseq
    %v177 = vshrl.u32 %v176, 7
    %v178 = vsub.s32 0, %v177
    %v179 = vrot.slane %v174, %v178
    %v181 = vmul.f32 %v179, %v164
    %v182 = vmul.f32 %v179, %v169
    %183 = vmatprep.subr.mxu0 0.0
    %184 = vmatpush1.xpose.msra.mxu0 %v80
    %185 = vmatprep.subr.mxu0 0.0
    %186 = vmatpush1.xpose.msra.mxu0 %v79
    %187 = vmatprep.subr.mxu0 0.0
    %188 = vmatpush1.xpose.msra.mxu0 %v78
    %189 = vmatprep.subr.mxu0 0.0
    %190 = vmatpush1.xpose.msra.mxu0 %v77
    %191 = vmatprep.subr.mxu0 0.0
    %192 = vmatpush1.xpose.msra.mxu0 %v76
    %193 = vmatprep.subr.mxu0 0.0
    %194 = vmatpush1.xpose.msra.mxu0 %v75
    %195 = vmatprep.subr.mxu0 0.0
    %196 = vmatpush1.xpose.msra.mxu0 %v74
    %197 = vmatprep.subr.mxu0 0.0
    %198 = vmatpush1.xpose.msra.mxu0 %v73
    %199 = vmatprep.subr.mxu0 0.0
    %200 = vmatpush1.xpose.msra.mxu0 %v72
    %201 = vmatprep.subr.mxu0 0.0
    %202 = vmatpush1.xpose.msra.mxu0 %v71
    %203 = vmatprep.subr.mxu0 0.0
    %204 = vmatpush1.xpose.msra.mxu0 %v70
    %205 = vmatprep.subr.mxu0 0.0
    %206 = vmatpush1.xpose.msra.mxu0 %v69
    %207 = vmatprep.subr.mxu0 0.0
    %208 = vmatpush1.xpose.msra.mxu0 %v68
    %209 = vmatprep.subr.mxu0 0.0
    %210 = vmatpush1.xpose.msra.mxu0 %v67
    %211 = vmatprep.subr.mxu0 0.0
    %212 = vmatpush1.xpose.msra.mxu0 %v66
    %213 = vmatprep.subr.mxu0 0.0
    %214 = vmatpush1.xpose.msra.mxu0 %v65
    %215 = vmatprep.subr.mxu0 0.0
    %216 = vmatpush2.xpose.msra.mxu0 0.0
    %217 = vmatprep.subr.mxu0 0.0
    %218 = vmatpush2.xpose.msra.mxu0 0.0
    %219 = vmatprep.subr.mxu0 0.0
    %220 = vmatpush2.xpose.msra.mxu0 0.0
    %221 = vmatprep.subr.mxu0 0.0
    %222 = vmatpush2.xpose.msra.mxu0 0.0
    %223 = vmatprep.subr.mxu0 0.0
    %224 = vmatpush2.xpose.msra.mxu0 0.0
    %225 = vmatprep.subr.mxu0 0.0
    %226 = vmatpush2.xpose.msra.mxu0 0.0
    %227 = vmatprep.subr.mxu0 0.0
    %228 = vmatpush2.xpose.msra.mxu0 0.0
    %229 = vmatprep.subr.mxu0 0.0
    %230 = vmatpush2.xpose.msra.mxu0 0.0
    %231 = vmatprep.subr.mxu0 0.0
    %232 = vmatpush2.xpose.msra.mxu0 0.0
    %233 = vmatprep.subr.mxu0 0.0
    %234 = vmatpush2.xpose.msra.mxu0 0.0
    %235 = vmatprep.subr.mxu0 0.0
    %236 = vmatpush2.xpose.msra.mxu0 0.0
    %237 = vmatprep.subr.mxu0 0.0
    %238 = vmatpush2.xpose.msra.mxu0 0.0
    %239 = vmatprep.subr.mxu0 0.0
    %240 = vmatpush2.xpose.msra.mxu0 0.0
    %241 = vmatprep.subr.mxu0 0.0
    %242 = vmatpush2.xpose.msra.mxu0 0.0
    %243 = vmatprep.subr.mxu0 0.0
    %244 = vmatpush2.xpose.msra.mxu0 0.0
    %245 = vmatprep.subr.mxu0 0.0
    %246 = vmatpush2.xpose.msra.mxu0 0.0
    %247 = vmatprep.mubr.f32.mxu0 0.0
    %248 = vmatmul.mubr.f32.gmra.mxu0 %v60
    %v249 = vpop.f32.mrf.mxu0
    %v250 = vadd.f32 %v181, %v249
    %v251 = vpop.f32.mrf.mxu0
    %252 = vmatprep.mubr.f32.mxu0 0.0
    %253 = vmatmul.mubr.f32.gmra.mxu0 %v61
    %v254 = vpop.f32.mrf.mxu0
    %v255 = vadd.f32 %v182, %v254
    %v256 = vpop.f32.mrf.mxu0
    %257 = vdwg.mxu0
    %v258 = vadd.f32 %v172, %v250
    %v259 = vadd.f32 %v173, %v255
    %260 = vst [vmem:[#allocation2] sm:$0xff] %v258
    %261 = vst [vmem:[#allocation2 + $0x8] sm:$0xff] %v259
    // Predicated region
    $region38: #{noisy_linear.1} parent=1 // pred_check
      %p262 = pneg %p52
    $region39: #{noisy_linear.1} parent=1 // pred_check_branch
      %264 = sbr.rel (%p262) target = $region41
    $region40: #{noisy_linear.1} parent=1 // pred_region
      %v265 = vld [vmem:[#allocation2] sm:$0xff]
      %v266 = vld [vmem:[#allocation2 + $0x8] sm:$0xff]
      %v267 = vld [vmem:[%s5] sm:$0x1]
      %v269 = vlaneseq
      %v270 = vshrl.u32 %v269, 7
      %v271 = vsub.s32 0, %v270
      %v272 = vrot.slane %v267, %v271
      %v274 = vadd.f32 %v265, %v272
      %v275 = vadd.f32 %v266, %v272
      %276 = vst [vmem:[#allocation8] sm:$0xff] %v274
      %277 = vst [vmem:[#allocation8 + $0x8] sm:$0xff] %v275
    $region41: #{noisy_linear.1} parent=1 // pred_fallthru
      _
    // Predicated region
    $region42: #{noisy_linear.1} parent=1 // pred_check
      _
    $region43: #{noisy_linear.1} parent=1 // pred_check_branch
      %279 = sbr.rel (0) target = $region45
    $region44: #{noisy_linear.1} parent=1 // pred_region
      %s281 = ssub.s32 256, 256
      %282 = vsyncadd [#allocation5], %s281
      %s283 = sshll.u32 [#allocation8], 4
      %s284 = int_to_ptr.vmem [resolvable:$true] %s283
      %289 = dma.vmem_to_hbm [thread:$0]  %s284, 256, %s6, [#allocation5], 128, 128, 8
    $region45: #{noisy_linear.1} parent=1 // pred_fallthru
      _
    // Predicated region
    $region46: #{noisy_linear.1} parent=1 // pred_check
      _
    $region47: #{noisy_linear.1} parent=1 // pred_check_branch
      %291 = sbr.rel (0) target = $region49
    $region48: #{noisy_linear.1} parent=1 // pred_region
      %292 = dma.done [#allocation5], 256
    $region49: #{noisy_linear.1} parent=1 // pred_fallthru
      _
    %293 = vsyncpa [#allocation4], 1
    %294 = vsyncpa [#allocation7], 1
    %295 = vsyncpa [#allocation5], 1

</llo_original>
